<compile_context>
chip_gen: v7x
topology: tpu7x:2x2x1
jax: 0.10.0
libtpu: 0.0.40
codegen_flags: <defaults>
</compile_context>

<pallas_src>
import jax
import jax.numpy as jnp
from jax.experimental import pallas as pl
from jax.experimental.pallas import tpu as pltpu

IN_DIM = 19
H1 = 128
H2 = 256
OUT_DIM = 3
OUT_SUB = 8            # output features padded 3 -> 8 sublane rows (f32 sublane tile)
DEFAULT_BM = 2048      # batch tile (multiple of 128); sweep 1024-4096 for huge batches


def _round_up(n, m):
    return ((n + m - 1) // m) * m


def _choose_bm(batch, bm_max=DEFAULT_BM):
    """Batch tile: multiple of 128; >=2 grid steps for medium/large batches (v7x 2 TCs)."""
    b128 = _round_up(max(batch, 1), 128)
    if b128 <= 256:                      # tiny batch: one small tile
        return b128
    half = _round_up((b128 + 1) // 2, 128)
    return min(_round_up(bm_max, 128), half)


def mlp_kernel(xT_ref, w1T_ref, b1T_ref, w2T_ref, b2T_ref, w3T_ref, b3T_ref, oT_ref):
    # xT:(19,bm) bf16; w1T:(128,19) bf16; w2T:(256,128) bf16; w3T:(8,256) bf16
    # biases are f32 column vectors; output block is (8,bm) f32 (rows 3..7 are zero).
    xT = xT_ref[...]

    h1 = jnp.dot(w1T_ref[...], xT, preferred_element_type=jnp.float32) + b1T_ref[...]
    h1 = jnp.maximum(h1, 0.0).astype(jnp.bfloat16)          # ReLU (f32) -> bf16 for MXU

    h2 = jnp.dot(w2T_ref[...], h1, preferred_element_type=jnp.float32) + b2T_ref[...]
    h2 = jnp.maximum(h2, 0.0).astype(jnp.bfloat16)          # ReLU (f32) -> bf16 for MXU

    y = jnp.dot(w3T_ref[...], h2, preferred_element_type=jnp.float32) + b3T_ref[...]
    oT_ref[...] = y.astype(oT_ref.dtype)                    # (8, bm) f32


def pack_params(params_f32):
    """Transpose to feature-major, cast weights to bf16, pad layer-3 to 8 output rows."""
    w1, b1, w2, b2, w3, b3 = params_f32          # w:(in,out), b:(1,out), all f32
    w3T = jnp.zeros((OUT_SUB, H2), jnp.float32).at[:OUT_DIM, :].set(w3.T)
    b3T = jnp.zeros((OUT_SUB, 1), jnp.float32).at[:OUT_DIM, :].set(b3.T)
    return (
        w1.T.astype(jnp.bfloat16), b1.T.astype(jnp.float32),   # (128,19), (128,1)
        w2.T.astype(jnp.bfloat16), b2.T.astype(jnp.float32),   # (256,128),(256,1)
        w3T.astype(jnp.bfloat16),  b3T.astype(jnp.float32),    # (8,256),  (8,1)
    )


def mlp_forward(x, packed_params, *, bm_max=DEFAULT_BM):
    w1T, b1T, w2T, b2T, w3T, b3T = packed_params
    B = x.shape[0]
    if B == 0:
        return jnp.zeros((0, OUT_DIM), jnp.float32)

    bm = _choose_bm(B, bm_max)
    Bp = _round_up(B, bm)

    # Single fused wrapper op: transpose to feature-major, cast to bf16, pad batch lanes.
    xT = x.T.astype(jnp.bfloat16)
    if Bp != B:
        xT = jnp.pad(xT, ((0, 0), (0, Bp - B)))

    grid = (Bp // bm,)
    in_specs = [
        pl.BlockSpec((IN_DIM, bm), lambda i: (0, i)),
        pl.BlockSpec((H1, IN_DIM), lambda i: (0, 0)),
        pl.BlockSpec((H1, 1), lambda i: (0, 0)),
        pl.BlockSpec((H2, H1), lambda i: (0, 0)),
        pl.BlockSpec((H2, 1), lambda i: (0, 0)),
        pl.BlockSpec((OUT_SUB, H2), lambda i: (0, 0)),
        pl.BlockSpec((OUT_SUB, 1), lambda i: (0, 0)),
    ]
    out_specs = pl.BlockSpec((OUT_SUB, bm), lambda i: (0, i))

    outT = pl.pallas_call(
        mlp_kernel,
        out_shape=jax.ShapeDtypeStruct((OUT_SUB, Bp), jnp.float32),
        grid_spec=pltpu.PrefetchScalarGridSpec(
            num_scalar_prefetch=0,
            grid=grid,
            in_specs=in_specs,
            out_specs=out_specs,
        ),
        compiler_params=pltpu.CompilerParams(
            dimension_semantics=("parallel",),   # shards batch tiles across TCs on v7x
        ),
    )(xT, w1T, b1T, w2T, b2T, w3T, b3T)

    # Slice the real features / batch out of the (8, Bp) slab and go back to row-major.
    return outT[:OUT_DIM, :B].T


def init_params(key):
    """Deterministic init mirroring nn.Linear default (uniform(-1/sqrt(fan_in), +))."""
    ks = jax.random.split(key, 6)

    def linear(kw, kb, fan_in, fan_out):
        bound = 1.0 / jnp.sqrt(fan_in)
        # stored as (in, out): row-major forward is x @ W (== x @ W_torch.T)
        w = jax.random.uniform(kw, (fan_in, fan_out), jnp.float32, -bound, bound)
        b = jax.random.uniform(kb, (1, fan_out), jnp.float32, -bound, bound)
        return w, b

    w1, b1 = linear(ks[0], ks[1], IN_DIM, H1)
    w2, b2 = linear(ks[2], ks[3], H1, H2)
    w3, b3 = linear(ks[4], ks[5], H2, OUT_DIM)
    return (w1, b1, w2, b2, w3, b3)


def reference_forward(x, params_f32):
    w1, b1, w2, b2, w3, b3 = params_f32
    h1 = jnp.maximum(x @ w1 + b1, 0.0)
    h2 = jnp.maximum(h1 @ w2 + b2, 0.0)
    return h2 @ w3 + b3


if __name__ == "__main__":
    key = jax.random.PRNGKey(0)
    k_params, k_x1, k_x2 = jax.random.split(key, 3)

    params_f32 = init_params(k_params)
    packed = pack_params(params_f32)

    # Small batch (single tile) + a medium batch that exercises padding and a 2-step grid.
    for batch, kx in ((8, k_x1), (300, k_x2)):
        x = jax.random.normal(kx, (batch, IN_DIM), jnp.float32)
        out = jax.block_until_ready(mlp_forward(x, packed))
        ref = reference_forward(x, params_f32)
        assert out.shape == (batch, OUT_DIM)
        # bf16 matmul inputs with f32 accumulation: ~1e-2 relative vs the f32 reference.
        assert jnp.allclose(out, ref, atol=5e-2, rtol=5e-2), f"mismatch at batch={batch}"

    print("KERNEL_OK")
</pallas_src>

<mosaic_0001>
module attributes {stable_mosaic.version = 11 : i64} {
  func.func @mlp_kernel(%arg0: i32, %arg1: memref<19x128xbf16, #tpu.memory_space<vmem>>, %arg2: memref<128x19xbf16, #tpu.memory_space<vmem>>, %arg3: memref<128x1xf32, #tpu.memory_space<vmem>>, %arg4: memref<256x128xbf16, #tpu.memory_space<vmem>>, %arg5: memref<256x1xf32, #tpu.memory_space<vmem>>, %arg6: memref<8x256xbf16, #tpu.memory_space<vmem>>, %arg7: memref<8x1xf32, #tpu.memory_space<vmem>>, %arg8: memref<8x128xf32, #tpu.memory_space<vmem>>) attributes {dimension_semantics = [#tpu.dimension_semantics<parallel>], iteration_bounds = array<i64: 1>, scalar_prefetch = 0 : i64, scratch_operands = 0 : i64, tpu.core_type = #tpu.core_type<tc>, window_params = [{transform_indices = @transform_0, window_bounds = array<i64: 19, 128>}, {pipeline_mode = #tpu.pipeline_mode<synchronous>, transform_indices = @transform_1, window_bounds = array<i64: 128, 19>}, {pipeline_mode = #tpu.pipeline_mode<synchronous>, transform_indices = @transform_2, window_bounds = array<i64: 128, 1>}, {pipeline_mode = #tpu.pipeline_mode<synchronous>, transform_indices = @transform_3, window_bounds = array<i64: 256, 128>}, {pipeline_mode = #tpu.pipeline_mode<synchronous>, transform_indices = @transform_4, window_bounds = array<i64: 256, 1>}, {pipeline_mode = #tpu.pipeline_mode<synchronous>, transform_indices = @transform_5, window_bounds = array<i64: 8, 256>}, {pipeline_mode = #tpu.pipeline_mode<synchronous>, transform_indices = @transform_6, window_bounds = array<i64: 8, 1>}, {transform_indices = @transform_7, window_bounds = array<i64: 8, 128>}]} {
    %c0 = arith.constant 0 : index
    %c0_0 = arith.constant 0 : index
    %0 = vector.load %arg1[%c0, %c0_0] : memref<19x128xbf16, #tpu.memory_space<vmem>>, vector<19x128xbf16>
    %c0_1 = arith.constant 0 : index
    %c0_2 = arith.constant 0 : index
    %1 = vector.load %arg2[%c0_1, %c0_2] : memref<128x19xbf16, #tpu.memory_space<vmem>>, vector<128x19xbf16>
    %cst = arith.constant dense<0.000000e+00> : vector<128x128xf32>
    %2 = tpu.matmul %1, %0, %cst {dimension_numbers = #tpu.dot_dimension_numbers<[1], [0], [0], [1], [0, 0, 1, 1], [], []>} : vector<128x19xbf16>, vector<19x128xbf16>, vector<128x128xf32> -> vector<128x128xf32>
    %c0_3 = arith.constant 0 : index
    %c0_4 = arith.constant 0 : index
    %3 = vector.load %arg3[%c0_3, %c0_4] : memref<128x1xf32, #tpu.memory_space<vmem>>, vector<128x1xf32>
    %4 = vector.broadcast %3 : vector<128x1xf32> to vector<128x128xf32>
    %5 = arith.addf %2, %4 : vector<128x128xf32>
    %cst_5 = arith.constant 0.000000e+00 : f32
    %6 = vector.broadcast %cst_5 : f32 to vector<128x128xf32>
    %7 = arith.maximumf %5, %6 : vector<128x128xf32>
    %8 = arith.truncf %7 : vector<128x128xf32> to vector<128x128xbf16>
    %c0_6 = arith.constant 0 : index
    %c0_7 = arith.constant 0 : index
    %9 = vector.load %arg4[%c0_6, %c0_7] : memref<256x128xbf16, #tpu.memory_space<vmem>>, vector<256x128xbf16>
    %cst_8 = arith.constant dense<0.000000e+00> : vector<256x128xf32>
    %10 = tpu.matmul %9, %8, %cst_8 {dimension_numbers = #tpu.dot_dimension_numbers<[1], [0], [0], [1], [0, 0, 1, 1], [], []>} : vector<256x128xbf16>, vector<128x128xbf16>, vector<256x128xf32> -> vector<256x128xf32>
    %c0_9 = arith.constant 0 : index
    %c0_10 = arith.constant 0 : index
    %11 = vector.load %arg5[%c0_9, %c0_10] : memref<256x1xf32, #tpu.memory_space<vmem>>, vector<256x1xf32>
    %12 = vector.broadcast %11 : vector<256x1xf32> to vector<256x128xf32>
    %13 = arith.addf %10, %12 : vector<256x128xf32>
    %cst_11 = arith.constant 0.000000e+00 : f32
    %14 = vector.broadcast %cst_11 : f32 to vector<256x128xf32>
    %15 = arith.maximumf %13, %14 : vector<256x128xf32>
    %16 = arith.truncf %15 : vector<256x128xf32> to vector<256x128xbf16>
    %c0_12 = arith.constant 0 : index
    %c0_13 = arith.constant 0 : index
    %17 = vector.load %arg6[%c0_12, %c0_13] : memref<8x256xbf16, #tpu.memory_space<vmem>>, vector<8x256xbf16>
    %cst_14 = arith.constant dense<0.000000e+00> : vector<8x128xf32>
    %18 = tpu.matmul %17, %16, %cst_14 {dimension_numbers = #tpu.dot_dimension_numbers<[1], [0], [0], [1], [0, 0, 1, 1], [], []>} : vector<8x256xbf16>, vector<256x128xbf16>, vector<8x128xf32> -> vector<8x128xf32>
    %c0_15 = arith.constant 0 : index
    %c0_16 = arith.constant 0 : index
    %19 = vector.load %arg7[%c0_15, %c0_16] : memref<8x1xf32, #tpu.memory_space<vmem>>, vector<8x1xf32>
    %20 = vector.broadcast %19 : vector<8x1xf32> to vector<8x128xf32>
    %21 = arith.addf %18, %20 : vector<8x128xf32>
    %c0_17 = arith.constant 0 : index
    %c0_18 = arith.constant 0 : index
    %22 = vector.load %arg8[%c0_17, %c0_18] : memref<8x128xf32, #tpu.memory_space<vmem>>, vector<8x128xf32>
    tpu.vector_store %arg8[%c0_17, %c0_18], %21 {strides = array<i32>} : memref<8x128xf32, #tpu.memory_space<vmem>>, vector<8x128xf32>,
    return
  }
  func.func @transform_0(%arg0: i32) -> (i32, i32) {
    %c0_i32 = arith.constant 0 : i32
    %c0_i32_0 = arith.constant 0 : i32
    return %c0_i32, %arg0 : i32, i32
  }
  func.func @transform_1(%arg0: i32) -> (i32, i32) {
    %c0_i32 = arith.constant 0 : i32
    %c0_i32_0 = arith.constant 0 : i32
    %c0_i32_1 = arith.constant 0 : i32
    return %c0_i32, %c0_i32_0 : i32, i32
  }
  func.func @transform_2(%arg0: i32) -> (i32, i32) {
    %c0_i32 = arith.constant 0 : i32
    %c0_i32_0 = arith.constant 0 : i32
    %c0_i32_1 = arith.constant 0 : i32
    return %c0_i32, %c0_i32_0 : i32, i32
  }
  func.func @transform_3(%arg0: i32) -> (i32, i32) {
    %c0_i32 = arith.constant 0 : i32
    %c0_i32_0 = arith.constant 0 : i32
    %c0_i32_1 = arith.constant 0 : i32
    return %c0_i32, %c0_i32_0 : i32, i32
  }
  func.func @transform_4(%arg0: i32) -> (i32, i32) {
    %c0_i32 = arith.constant 0 : i32
    %c0_i32_0 = arith.constant 0 : i32
    %c0_i32_1 = arith.constant 0 : i32
    return %c0_i32, %c0_i32_0 : i32, i32
  }
  func.func @transform_5(%arg0: i32) -> (i32, i32) {
    %c0_i32 = arith.constant 0 : i32
    %c0_i32_0 = arith.constant 0 : i32
    %c0_i32_1 = arith.constant 0 : i32
    return %c0_i32, %c0_i32_0 : i32, i32
  }
  func.func @transform_6(%arg0: i32) -> (i32, i32) {
    %c0_i32 = arith.constant 0 : i32
    %c0_i32_0 = arith.constant 0 : i32
    %c0_i32_1 = arith.constant 0 : i32
    return %c0_i32, %c0_i32_0 : i32, i32
  }
  func.func @transform_7(%arg0: i32) -> (i32, i32) {
    %c0_i32 = arith.constant 0 : i32
    %c0_i32_0 = arith.constant 0 : i32
    return %c0_i32, %arg0 : i32, i32
  }
}

</mosaic_0001>

<llo_original>
// kernel: tpu_custom_call.1
$region0: #{tpu_custom_call.1}
  #allocation0 [shape = 'u32[]', space=smem, size = 0x4, offset = 0x4, fixed_abs, tag = 'smem constant byte address 0x4 - core index']
  #allocation1 [shape = 'u32[144,128]{1,0:T(1,128)}', space=vmem, size = 0x12000, scoped, tag = 'internal scratch']
  %s0 = inlined_call_operand.vmem [shape: bf16[19,128], index: 0, kind: input, shape index: {}]
  %s1 = inlined_call_operand.vmem [shape: bf16[128,19], index: 1, kind: input, shape index: {}]
  %s2 = inlined_call_operand.vmem [shape: f32[128,1], index: 2, kind: input, shape index: {}]
  %s3 = inlined_call_operand.vmem [shape: bf16[256,128], index: 3, kind: input, shape index: {}]
  %s4 = inlined_call_operand.vmem [shape: f32[256,1], index: 4, kind: input, shape index: {}]
  %s5 = inlined_call_operand.vmem [shape: bf16[8,256], index: 5, kind: input, shape index: {}]
  %s6 = inlined_call_operand.vmem [shape: f32[8,1], index: 6, kind: input, shape index: {}]
  %s7 = inlined_call_operand.hbm [shape: f32[8,128], index: 7, kind: output, shape index: {}]
  %s8 = sld [smem:[#allocation0]]
  $region38: #{tpu_custom_call.1} parent=0
    _
  %s10 = ssub.s32 1, %s8
  %s11 = scalar_select 0, %s10, %s8
  $region1: #{tpu_custom_call.1} parent=0
    #allocation2 [shape = 'u8[4096]{0}', space=vmem, size = 0x1000, scoped, tag = 'output window, operand 0, single buffered']
    #allocation3 [shape = 's32[1]{0}', space=sflag, size = 0x4, scoped, tag = 'scoped memory for tpu_custom_call.1']
    %12 = vsyncpa [#allocation3], 0
    // Predicated region
    $region2: #{tpu_custom_call.1} parent=1 // pred_check
      _
    $region3: #{tpu_custom_call.1} parent=1 // pred_check_branch
      %14 = sbr.rel (0) target = $region5
    $region4: #{tpu_custom_call.1} parent=1 // pred_region
      _
    $region5: #{tpu_custom_call.1} parent=1 // pred_fallthru
      _
    // Predicated region
    $region6: #{tpu_custom_call.1} parent=1 // pred_check
      _
    $region7: #{tpu_custom_call.1} parent=1 // pred_check_branch
      %16 = sbr.rel (0) target = $region9
    $region8: #{tpu_custom_call.1} parent=1 // pred_region
      _
    $region9: #{tpu_custom_call.1} parent=1 // pred_fallthru
      _
    // Predicated region
    $region10: #{tpu_custom_call.1} parent=1 // pred_check
      _
    $region11: #{tpu_custom_call.1} parent=1 // pred_check_branch
      %18 = sbr.rel (0) target = $region13
    $region12: #{tpu_custom_call.1} parent=1 // pred_region
      _
    $region13: #{tpu_custom_call.1} parent=1 // pred_fallthru
      _
    // Predicated region
    $region14: #{tpu_custom_call.1} parent=1 // pred_check
      _
    $region15: #{tpu_custom_call.1} parent=1 // pred_check_branch
      %20 = sbr.rel (0) target = $region17
    $region16: #{tpu_custom_call.1} parent=1 // pred_region
      _
    $region17: #{tpu_custom_call.1} parent=1 // pred_fallthru
      _
    // Predicated region
    $region18: #{tpu_custom_call.1} parent=1 // pred_check
      _
    $region19: #{tpu_custom_call.1} parent=1 // pred_check_branch
      %22 = sbr.rel (0) target = $region21
    $region20: #{tpu_custom_call.1} parent=1 // pred_region
      _
    $region21: #{tpu_custom_call.1} parent=1 // pred_fallthru
      _
    // Predicated region
    $region22: #{tpu_custom_call.1} parent=1 // pred_check
      _
    $region23: #{tpu_custom_call.1} parent=1 // pred_check_branch
      %24 = sbr.rel (0) target = $region25
    $region24: #{tpu_custom_call.1} parent=1 // pred_region
      _
    $region25: #{tpu_custom_call.1} parent=1 // pred_fallthru
      _
    // Predicated region
    $region26: #{tpu_custom_call.1} parent=1 // pred_check
      _
    $region27: #{tpu_custom_call.1} parent=1 // pred_check_branch
      %26 = sbr.rel (0) target = $region29
    $region28: #{tpu_custom_call.1} parent=1 // pred_region
      _
    $region29: #{tpu_custom_call.1} parent=1 // pred_fallthru
      _
    %v28 = vld [vmem:[%s0] sm:$0xf]
    %v29 = vld [vmem:[%s0 + $0x4] sm:$0xf]
    %v30 = vld [vmem:[%s0 + $0x8] sm:$0x3]
    %v31 = vld [vmem:[%s1] sm:$0xf]
    %v32 = vld [vmem:[%s1 + $0x4] sm:$0xf]
    %v33 = vld [vmem:[%s1 + $0x8] sm:$0xf]
    %v34 = vld [vmem:[%s1 + $0xc] sm:$0xf]
    %v35 = vld [vmem:[%s1 + $0x10] sm:$0xf]
    %v36 = vld [vmem:[%s1 + $0x14] sm:$0xf]
    %v37 = vld [vmem:[%s1 + $0x18] sm:$0xf]
    %v38 = vld [vmem:[%s1 + $0x1c] sm:$0xf]
    %v39 = vld [vmem:[%s1 + $0x20] sm:$0xf]
    %v40 = vld [vmem:[%s1 + $0x24] sm:$0xf]
    %v41 = vld [vmem:[%s1 + $0x28] sm:$0xf]
    %v42 = vld [vmem:[%s1 + $0x2c] sm:$0xf]
    %v43 = vld [vmem:[%s1 + $0x30] sm:$0xf]
    %v44 = vld [vmem:[%s1 + $0x34] sm:$0xf]
    %v45 = vld [vmem:[%s1 + $0x38] sm:$0xf]
    %v46 = vld [vmem:[%s1 + $0x3c] sm:$0xf]
    %v47 = vld [vmem:[%s2] sm:$0xff]
    %v48 = vld [vmem:[%s2 + $0x8] sm:$0xff]
    %v49 = vld [vmem:[%s2 + $0x10] sm:$0xff]
    %v50 = vld [vmem:[%s2 + $0x18] sm:$0xff]
    %v51 = vld [vmem:[%s2 + $0x20] sm:$0xff]
    %v52 = vld [vmem:[%s2 + $0x28] sm:$0xff]
    %v53 = vld [vmem:[%s2 + $0x30] sm:$0xff]
    %v54 = vld [vmem:[%s2 + $0x38] sm:$0xff]
    %v55 = vld [vmem:[%s2 + $0x40] sm:$0xff]
    %v56 = vld [vmem:[%s2 + $0x48] sm:$0xff]
    %v57 = vld [vmem:[%s2 + $0x50] sm:$0xff]
    %v58 = vld [vmem:[%s2 + $0x58] sm:$0xff]
    %v59 = vld [vmem:[%s2 + $0x60] sm:$0xff]
    %v60 = vld [vmem:[%s2 + $0x68] sm:$0xff]
    %v61 = vld [vmem:[%s2 + $0x70] sm:$0xff]
    %v62 = vld [vmem:[%s2 + $0x78] sm:$0xff]
    %64 = vset.pattern.permute.xlu0 0
    %65 = vperm.xlu0 %64, %v47
    %v66 = vpop.permute.xlu0 %65
    %69 = vset.pattern.permute.xlu0 0
    %70 = vperm.xlu0 %69, %v48
    %v71 = vpop.permute.xlu0 %70
    %74 = vset.pattern.permute.xlu0 0
    %75 = vperm.xlu0 %74, %v49
    %v76 = vpop.permute.xlu0 %75
    %79 = vset.pattern.permute.xlu0 0
    %80 = vperm.xlu0 %79, %v50
    %v81 = vpop.permute.xlu0 %80
    %84 = vset.pattern.permute.xlu0 0
    %85 = vperm.xlu0 %84, %v51
    %v86 = vpop.permute.xlu0 %85
    %89 = vset.pattern.permute.xlu0 0
    %90 = vperm.xlu0 %89, %v52
    %v91 = vpop.permute.xlu0 %90
    %94 = vset.pattern.permute.xlu0 0
    %95 = vperm.xlu0 %94, %v53
    %v96 = vpop.permute.xlu0 %95
    %99 = vset.pattern.permute.xlu0 0
    %100 = vperm.xlu0 %99, %v54
    %v101 = vpop.permute.xlu0 %100
    %104 = vset.pattern.permute.xlu0 0
    %105 = vperm.xlu0 %104, %v55
    %v106 = vpop.permute.xlu0 %105
    %109 = vset.pattern.permute.xlu0 0
    %110 = vperm.xlu0 %109, %v56
    %v111 = vpop.permute.xlu0 %110
    %114 = vset.pattern.permute.xlu0 0
    %115 = vperm.xlu0 %114, %v57
    %v116 = vpop.permute.xlu0 %115
    %119 = vset.pattern.permute.xlu0 0
    %120 = vperm.xlu0 %119, %v58
    %v121 = vpop.permute.xlu0 %120
    %124 = vset.pattern.permute.xlu0 0
    %125 = vperm.xlu0 %124, %v59
    %v126 = vpop.permute.xlu0 %125
    %129 = vset.pattern.permute.xlu0 0
    %130 = vperm.xlu0 %129, %v60
    %v131 = vpop.permute.xlu0 %130
    %134 = vset.pattern.permute.xlu0 0
    %135 = vperm.xlu0 %134, %v61
    %v136 = vpop.permute.xlu0 %135
    %139 = vset.pattern.permute.xlu0 0
    %140 = vperm.xlu0 %139, %v62
    %v141 = vpop.permute.xlu0 %140
    %v159 = vunpack.c.l.b16 %v31
    %v160 = vunpack.c.l.b16 %v32
    %v161 = vunpack.c.l.b16 %v33
    %v162 = vunpack.c.l.b16 %v34
    %v163 = vunpack.c.l.b16 %v35
    %v164 = vunpack.c.l.b16 %v36
    %v165 = vunpack.c.l.b16 %v37
    %v166 = vunpack.c.l.b16 %v38
    %v167 = vunpack.c.l.b16 %v39
    %v168 = vunpack.c.l.b16 %v40
    %v169 = vunpack.c.l.b16 %v41
    %v170 = vunpack.c.l.b16 %v42
    %v171 = vunpack.c.l.b16 %v43
    %v172 = vunpack.c.l.b16 %v44
    %v173 = vunpack.c.l.b16 %v45
    %v174 = vunpack.c.l.b16 %v46
    %v175 = vpack.c.b16 %v160, %v159
    %v176 = vpack.c.b16 %v162, %v161
    %v177 = vpack.c.b16 %v164, %v163
    %v178 = vpack.c.b16 %v166, %v165
    %v179 = vpack.c.b16 %v168, %v167
    %v180 = vpack.c.b16 %v170, %v169
    %v181 = vpack.c.b16 %v172, %v171
    %v182 = vpack.c.b16 %v174, %v173
    %v186 = vunpack.c.l.b16 %v28
    %v187 = vunpack.c.l.b16 %v29
    %v188 = vunpack.c.l.b16 %v30
    %v189 = vpack.c.b16 %v187, %v186
    %v190 = vpack.c.b16 %v188, %v188
    %vm192 = vcmask 154624
    %v194 = vsel %vm192, %v175, 0
    %v197 = vsel %vm192, %v176, 0
    %v200 = vsel %vm192, %v177, 0
    %v203 = vsel %vm192, %v178, 0
    %v206 = vsel %vm192, %v179, 0
    %v209 = vsel %vm192, %v180, 0
    %v212 = vsel %vm192, %v181, 0
    %v215 = vsel %vm192, %v182, 0
    %vm217 = vcmask 1040384
    %vm218 = vcmask 1041408
    %v219 = vsel %vm217, 4294967295, 65535
    %v220 = vsel %vm218, %v219, 0
    %v222 = vand.u32 %v190, %v220
    %224 = vmatprep.subr.bf16.mxu0 0
    %225 = vmatpush1.bf16.msra.mxu0 %v189
    %226 = vmatprep.subr.bf16.mxu0 0
    %227 = vmatpush1.bf16.msra.mxu0 %v222
    %228 = vmatprep.subr.bf16.mxu0 0
    %229 = vmatpush1.bf16.msra.mxu0 0
    %230 = vmatprep.subr.bf16.mxu0 0
    %231 = vmatpush1.bf16.msra.mxu0 0
    %232 = vmatprep.subr.bf16.mxu0 0
    %233 = vmatpush1.bf16.msra.mxu0 0
    %234 = vmatprep.subr.bf16.mxu0 0
    %235 = vmatpush1.bf16.msra.mxu0 0
    %236 = vmatprep.subr.bf16.mxu0 0
    %237 = vmatpush1.bf16.msra.mxu0 0
    %238 = vmatprep.subr.bf16.mxu0 0
    %239 = vmatpush1.bf16.msra.mxu0 0
    %240 = vmatprep.subr.bf16.mxu0 0
    %241 = vmatpush1.bf16.msra.mxu0 0
    %242 = vmatprep.subr.bf16.mxu0 0
    %243 = vmatpush1.bf16.msra.mxu0 0
    %244 = vmatprep.subr.bf16.mxu0 0
    %245 = vmatpush1.bf16.msra.mxu0 0
    %246 = vmatprep.subr.bf16.mxu0 0
    %247 = vmatpush1.bf16.msra.mxu0 0
    %248 = vmatprep.subr.bf16.mxu0 0
    %249 = vmatpush1.bf16.msra.mxu0 0
    %250 = vmatprep.subr.bf16.mxu0 0
    %251 = vmatpush1.bf16.msra.mxu0 0
    %252 = vmatprep.subr.bf16.mxu0 0
    %253 = vmatpush1.bf16.msra.mxu0 0
    %254 = vmatprep.subr.bf16.mxu0 0
    %255 = vmatpush1.bf16.msra.mxu0 0
    %256 = vmatprep.mubr.bf16.mxu0 0
    %257 = vmatmul.mubr.bf16.gmra.mrb[0].mxu0 %v194
    %v258 = vpop.f32.mrb[0].mxu0
    %v259 = vadd.f32 %v66, %v258
    %v260 = vpop.f32.mrb[0].mxu0
    %v261 = vpop.f32.mrb[0].mxu0
    %v262 = vadd.f32 %v71, %v261
    %v263 = vpop.f32.mrb[0].mxu0
    %264 = vmatprep.mubr.bf16.mxu0 0
    %265 = vmatmul.mubr.bf16.gmra.mrb[0].mxu0 %v197
    %v266 = vpop.f32.mrb[0].mxu0
    %v267 = vadd.f32 %v76, %v266
    %v268 = vpop.f32.mrb[0].mxu0
    %v269 = vpop.f32.mrb[0].mxu0
    %v270 = vadd.f32 %v81, %v269
    %v271 = vpop.f32.mrb[0].mxu0
    %272 = vmatprep.mubr.bf16.mxu0 0
    %273 = vmatmul.mubr.bf16.gmra.mrb[0].mxu0 %v200
    %v274 = vpop.f32.mrb[0].mxu0
    %v275 = vadd.f32 %v86, %v274
    %v276 = vpop.f32.mrb[0].mxu0
    %v277 = vpop.f32.mrb[0].mxu0
    %v278 = vadd.f32 %v91, %v277
    %v279 = vpop.f32.mrb[0].mxu0
    %280 = vmatprep.mubr.bf16.mxu0 0
    %281 = vmatmul.mubr.bf16.gmra.mrb[0].mxu0 %v203
    %v282 = vpop.f32.mrb[0].mxu0
    %v283 = vadd.f32 %v96, %v282
    %v284 = vpop.f32.mrb[0].mxu0
    %v285 = vpop.f32.mrb[0].mxu0
    %v286 = vadd.f32 %v101, %v285
    %v287 = vpop.f32.mrb[0].mxu0
    %288 = vmatprep.mubr.bf16.mxu0 0
    %289 = vmatmul.mubr.bf16.gmra.mrb[0].mxu0 %v206
    %v290 = vpop.f32.mrb[0].mxu0
    %v291 = vadd.f32 %v106, %v290
    %v292 = vpop.f32.mrb[0].mxu0
    %v293 = vpop.f32.mrb[0].mxu0
    %v294 = vadd.f32 %v111, %v293
    %v295 = vpop.f32.mrb[0].mxu0
    %296 = vmatprep.mubr.bf16.mxu0 0
    %297 = vmatmul.mubr.bf16.gmra.mrb[0].mxu0 %v209
    %v298 = vpop.f32.mrb[0].mxu0
    %v299 = vadd.f32 %v116, %v298
    %v300 = vpop.f32.mrb[0].mxu0
    %v301 = vpop.f32.mrb[0].mxu0
    %v302 = vadd.f32 %v121, %v301
    %v303 = vpop.f32.mrb[0].mxu0
    %304 = vmatprep.mubr.bf16.mxu0 0
    %305 = vmatmul.mubr.bf16.gmra.mrb[0].mxu0 %v212
    %v306 = vpop.f32.mrb[0].mxu0
    %v307 = vadd.f32 %v126, %v306
    %v308 = vpop.f32.mrb[0].mxu0
    %v309 = vpop.f32.mrb[0].mxu0
    %v310 = vadd.f32 %v131, %v309
    %v311 = vpop.f32.mrb[0].mxu0
    %312 = vmatprep.mubr.bf16.mxu0 0
    %313 = vmatmul.mubr.bf16.gmra.mrb[0].mxu0 %v215
    %v314 = vpop.f32.mrb[0].mxu0
    %v315 = vadd.f32 %v136, %v314
    %v316 = vpop.f32.mrb[0].mxu0
    %v317 = vpop.f32.mrb[0].mxu0
    %v318 = vadd.f32 %v141, %v317
    %v319 = vpop.f32.mrb[0].mxu0
    %320 = vdwg.mxu0
    %v321 = vmax.f32 %v259, 0.0
    %v322 = vmax.f32 %v262, 0.0
    %v323 = vmax.f32 %v267, 0.0
    %v324 = vmax.f32 %v270, 0.0
    %v325 = vmax.f32 %v275, 0.0
    %v326 = vmax.f32 %v278, 0.0
    %v327 = vmax.f32 %v283, 0.0
    %v328 = vmax.f32 %v286, 0.0
    %v329 = vmax.f32 %v291, 0.0
    %v330 = vmax.f32 %v294, 0.0
    %v331 = vmax.f32 %v299, 0.0
    %v332 = vmax.f32 %v302, 0.0
    %v333 = vmax.f32 %v307, 0.0
    %v334 = vmax.f32 %v310, 0.0
    %v335 = vmax.f32 %v315, 0.0
    %v336 = vmax.f32 %v318, 0.0
    %v337 = vpack.c.bf16 %v322, %v321
    %v338 = vpack.c.bf16 %v324, %v323
    %v339 = vpack.c.bf16 %v326, %v325
    %v340 = vpack.c.bf16 %v328, %v327
    %v341 = vpack.c.bf16 %v330, %v329
    %v342 = vpack.c.bf16 %v332, %v331
    %v343 = vpack.c.bf16 %v334, %v333
    %v344 = vpack.c.bf16 %v336, %v335
    %v345 = vld [vmem:[%s3] sm:$0xf]
    %v346 = vld [vmem:[%s3 + $0x4] sm:$0xf]
    %v347 = vld [vmem:[%s3 + $0x8] sm:$0xf]
    %v348 = vld [vmem:[%s3 + $0xc] sm:$0xf]
    %v349 = vld [vmem:[%s3 + $0x10] sm:$0xf]
    %v350 = vld [vmem:[%s3 + $0x14] sm:$0xf]
    %v351 = vld [vmem:[%s3 + $0x18] sm:$0xf]
    %v352 = vld [vmem:[%s3 + $0x1c] sm:$0xf]
    %v353 = vld [vmem:[%s3 + $0x20] sm:$0xf]
    %v354 = vld [vmem:[%s3 + $0x24] sm:$0xf]
    %v355 = vld [vmem:[%s3 + $0x28] sm:$0xf]
    %v356 = vld [vmem:[%s3 + $0x2c] sm:$0xf]
    %v357 = vld [vmem:[%s3 + $0x30] sm:$0xf]
    %v358 = vld [vmem:[%s3 + $0x34] sm:$0xf]
    %v359 = vld [vmem:[%s3 + $0x38] sm:$0xf]
    %v360 = vld [vmem:[%s3 + $0x3c] sm:$0xf]
    %v361 = vld [vmem:[%s3 + $0x40] sm:$0xf]
    %v362 = vld [vmem:[%s3 + $0x44] sm:$0xf]
    %v363 = vld [vmem:[%s3 + $0x48] sm:$0xf]
    %v364 = vld [vmem:[%s3 + $0x4c] sm:$0xf]
    %v365 = vld [vmem:[%s3 + $0x50] sm:$0xf]
    %v366 = vld [vmem:[%s3 + $0x54] sm:$0xf]
    %v367 = vld [vmem:[%s3 + $0x58] sm:$0xf]
    %v368 = vld [vmem:[%s3 + $0x5c] sm:$0xf]
    %v369 = vld [vmem:[%s3 + $0x60] sm:$0xf]
    %v370 = vld [vmem:[%s3 + $0x64] sm:$0xf]
    %v371 = vld [vmem:[%s3 + $0x68] sm:$0xf]
    %v372 = vld [vmem:[%s3 + $0x6c] sm:$0xf]
    %v373 = vld [vmem:[%s3 + $0x70] sm:$0xf]
    %v374 = vld [vmem:[%s3 + $0x74] sm:$0xf]
    %v375 = vld [vmem:[%s3 + $0x78] sm:$0xf]
    %v376 = vld [vmem:[%s3 + $0x7c] sm:$0xf]
    %v377 = vld [vmem:[%s4] sm:$0xff]
    %v378 = vld [vmem:[%s4 + $0x8] sm:$0xff]
    %v379 = vld [vmem:[%s4 + $0x10] sm:$0xff]
    %v380 = vld [vmem:[%s4 + $0x18] sm:$0xff]
    %v381 = vld [vmem:[%s4 + $0x20] sm:$0xff]
    %v382 = vld [vmem:[%s4 + $0x28] sm:$0xff]
    %v383 = vld [vmem:[%s4 + $0x30] sm:$0xff]
    %v384 = vld [vmem:[%s4 + $0x38] sm:$0xff]
    %v385 = vld [vmem:[%s4 + $0x40] sm:$0xff]
    %v386 = vld [vmem:[%s4 + $0x48] sm:$0xff]
    %v387 = vld [vmem:[%s4 + $0x50] sm:$0xff]
    %v388 = vld [vmem:[%s4 + $0x58] sm:$0xff]
    %v389 = vld [vmem:[%s4 + $0x60] sm:$0xff]
    %v390 = vld [vmem:[%s4 + $0x68] sm:$0xff]
    %v391 = vld [vmem:[%s4 + $0x70] sm:$0xff]
    %v392 = vld [vmem:[%s4 + $0x78] sm:$0xff]
    %v393 = vld [vmem:[%s4 + $0x80] sm:$0xff]
    %v394 = vld [vmem:[%s4 + $0x88] sm:$0xff]
    %v395 = vld [vmem:[%s4 + $0x90] sm:$0xff]
    %v396 = vld [vmem:[%s4 + $0x98] sm:$0xff]
    %v397 = vld [vmem:[%s4 + $0xa0] sm:$0xff]
    %v398 = vld [vmem:[%s4 + $0xa8] sm:$0xff]
    %v399 = vld [vmem:[%s4 + $0xb0] sm:$0xff]
    %v400 = vld [vmem:[%s4 + $0xb8] sm:$0xff]
    %v401 = vld [vmem:[%s4 + $0xc0] sm:$0xff]
    %v402 = vld [vmem:[%s4 + $0xc8] sm:$0xff]
    %v403 = vld [vmem:[%s4 + $0xd0] sm:$0xff]
    %v404 = vld [vmem:[%s4 + $0xd8] sm:$0xff]
    %v405 = vld [vmem:[%s4 + $0xe0] sm:$0xff]
    %v406 = vld [vmem:[%s4 + $0xe8] sm:$0xff]
    %v407 = vld [vmem:[%s4 + $0xf0] sm:$0xff]
    %v408 = vld [vmem:[%s4 + $0xf8] sm:$0xff]
    %410 = vset.pattern.permute.xlu0 0
    %411 = vperm.xlu0 %410, %v377
    %v412 = vpop.permute.xlu0 %411
    %415 = vset.pattern.permute.xlu0 0
    %416 = vperm.xlu0 %415, %v378
    %v417 = vpop.permute.xlu0 %416
    %420 = vset.pattern.permute.xlu0 0
    %421 = vperm.xlu0 %420, %v379
    %v422 = vpop.permute.xlu0 %421
    %425 = vset.pattern.permute.xlu0 0
    %426 = vperm.xlu0 %425, %v380
    %v427 = vpop.permute.xlu0 %426
    %430 = vset.pattern.permute.xlu0 0
    %431 = vperm.xlu0 %430, %v381
    %v432 = vpop.permute.xlu0 %431
    %435 = vset.pattern.permute.xlu0 0
    %436 = vperm.xlu0 %435, %v382
    %v437 = vpop.permute.xlu0 %436
    %440 = vset.pattern.permute.xlu0 0
    %441 = vperm.xlu0 %440, %v383
    %v442 = vpop.permute.xlu0 %441
    %445 = vset.pattern.permute.xlu0 0
    %446 = vperm.xlu0 %445, %v384
    %v447 = vpop.permute.xlu0 %446
    %450 = vset.pattern.permute.xlu0 0
    %451 = vperm.xlu0 %450, %v385
    %v452 = vpop.permute.xlu0 %451
    %455 = vset.pattern.permute.xlu0 0
    %456 = vperm.xlu0 %455, %v386
    %v457 = vpop.permute.xlu0 %456
    %460 = vset.pattern.permute.xlu0 0
    %461 = vperm.xlu0 %460, %v387
    %v462 = vpop.permute.xlu0 %461
    %465 = vset.pattern.permute.xlu0 0
    %466 = vperm.xlu0 %465, %v388
    %v467 = vpop.permute.xlu0 %466
    %470 = vset.pattern.permute.xlu0 0
    %471 = vperm.xlu0 %470, %v389
    %v472 = vpop.permute.xlu0 %471
    %475 = vset.pattern.permute.xlu0 0
    %476 = vperm.xlu0 %475, %v390
    %v477 = vpop.permute.xlu0 %476
    %480 = vset.pattern.permute.xlu0 0
    %481 = vperm.xlu0 %480, %v391
    %v482 = vpop.permute.xlu0 %481
    %485 = vset.pattern.permute.xlu0 0
    %486 = vperm.xlu0 %485, %v392
    %v487 = vpop.permute.xlu0 %486
    %490 = vset.pattern.permute.xlu0 0
    %491 = vperm.xlu0 %490, %v393
    %v492 = vpop.permute.xlu0 %491
    %495 = vset.pattern.permute.xlu0 0
    %496 = vperm.xlu0 %495, %v394
    %v497 = vpop.permute.xlu0 %496
    %500 = vset.pattern.permute.xlu0 0
    %501 = vperm.xlu0 %500, %v395
    %v502 = vpop.permute.xlu0 %501
    %505 = vset.pattern.permute.xlu0 0
    %506 = vperm.xlu0 %505, %v396
    %v507 = vpop.permute.xlu0 %506
    %510 = vset.pattern.permute.xlu0 0
    %511 = vperm.xlu0 %510, %v397
    %v512 = vpop.permute.xlu0 %511
    %515 = vset.pattern.permute.xlu0 0
    %516 = vperm.xlu0 %515, %v398
    %v517 = vpop.permute.xlu0 %516
    %520 = vset.pattern.permute.xlu0 0
    %521 = vperm.xlu0 %520, %v399
    %v522 = vpop.permute.xlu0 %521
    %525 = vset.pattern.permute.xlu0 0
    %526 = vperm.xlu0 %525, %v400
    %v527 = vpop.permute.xlu0 %526
    %530 = vset.pattern.permute.xlu0 0
    %531 = vperm.xlu0 %530, %v401
    %v532 = vpop.permute.xlu0 %531
    %535 = vset.pattern.permute.xlu0 0
    %536 = vperm.xlu0 %535, %v402
    %v537 = vpop.permute.xlu0 %536
    %540 = vset.pattern.permute.xlu0 0
    %541 = vperm.xlu0 %540, %v403
    %v542 = vpop.permute.xlu0 %541
    %545 = vset.pattern.permute.xlu0 0
    %546 = vperm.xlu0 %545, %v404
    %v547 = vpop.permute.xlu0 %546
    %550 = vset.pattern.permute.xlu0 0
    %551 = vperm.xlu0 %550, %v405
    %v552 = vpop.permute.xlu0 %551
    %555 = vset.pattern.permute.xlu0 0
    %556 = vperm.xlu0 %555, %v406
    %v557 = vpop.permute.xlu0 %556
    %560 = vset.pattern.permute.xlu0 0
    %561 = vperm.xlu0 %560, %v407
    %v562 = vpop.permute.xlu0 %561
    %565 = vset.pattern.permute.xlu0 0
    %566 = vperm.xlu0 %565, %v408
    %v567 = vpop.permute.xlu0 %566
    %v601 = vunpack.c.l.b16 %v345
    %v602 = vunpack.c.l.b16 %v346
    %v603 = vunpack.c.l.b16 %v347
    %v604 = vunpack.c.l.b16 %v348
    %v605 = vunpack.c.l.b16 %v349
    %v606 = vunpack.c.l.b16 %v350
    %v607 = vunpack.c.l.b16 %v351
    %v608 = vunpack.c.l.b16 %v352
    %v609 = vunpack.c.l.b16 %v353
    %v610 = vunpack.c.l.b16 %v354
    %v611 = vunpack.c.l.b16 %v355
    %v612 = vunpack.c.l.b16 %v356
    %v613 = vunpack.c.l.b16 %v357
    %v614 = vunpack.c.l.b16 %v358
    %v615 = vunpack.c.l.b16 %v359
    %v616 = vunpack.c.l.b16 %v360
    %v617 = vunpack.c.l.b16 %v361
    %v618 = vunpack.c.l.b16 %v362
    %v619 = vunpack.c.l.b16 %v363
    %v620 = vunpack.c.l.b16 %v364
    %v621 = vunpack.c.l.b16 %v365
    %v622 = vunpack.c.l.b16 %v366
    %v623 = vunpack.c.l.b16 %v367
    %v624 = vunpack.c.l.b16 %v368
    %v625 = vunpack.c.l.b16 %v369
    %v626 = vunpack.c.l.b16 %v370
    %v627 = vunpack.c.l.b16 %v371
    %v628 = vunpack.c.l.b16 %v372
    %v629 = vunpack.c.l.b16 %v373
    %v630 = vunpack.c.l.b16 %v374
    %v631 = vunpack.c.l.b16 %v375
    %v632 = vunpack.c.l.b16 %v376
    %v633 = vpack.c.b16 %v602, %v601
    %v634 = vpack.c.b16 %v604, %v603
    %v635 = vpack.c.b16 %v606, %v605
    %v636 = vpack.c.b16 %v608, %v607
    %v637 = vpack.c.b16 %v610, %v609
    %v638 = vpack.c.b16 %v612, %v611
    %v639 = vpack.c.b16 %v614, %v613
    %v640 = vpack.c.b16 %v616, %v615
    %v641 = vpack.c.b16 %v618, %v617
    %v642 = vpack.c.b16 %v620, %v619
    %v643 = vpack.c.b16 %v622, %v621
    %v644 = vpack.c.b16 %v624, %v623
    %v645 = vpack.c.b16 %v626, %v625
    %v646 = vpack.c.b16 %v628, %v627
    %v647 = vpack.c.b16 %v630, %v629
    %v648 = vpack.c.b16 %v632, %v631
    %665 = vmatprep.subr.bf16.mxu0 0
    %666 = vmatpush1.bf16.msra.mxu0 %v337
    %667 = vmatprep.subr.bf16.mxu0 0
    %668 = vmatpush1.bf16.msra.mxu0 %v338
    %669 = vmatprep.subr.bf16.mxu0 0
    %670 = vmatpush1.bf16.msra.mxu0 %v339
    %671 = vmatprep.subr.bf16.mxu0 0
    %672 = vmatpush1.bf16.msra.mxu0 %v340
    %673 = vmatprep.subr.bf16.mxu0 0
    %674 = vmatpush1.bf16.msra.mxu0 %v341
    %675 = vmatprep.subr.bf16.mxu0 0
    %676 = vmatpush1.bf16.msra.mxu0 %v342
    %677 = vmatprep.subr.bf16.mxu0 0
    %678 = vmatpush1.bf16.msra.mxu0 %v343
    %679 = vmatprep.subr.bf16.mxu0 0
    %680 = vmatpush1.bf16.msra.mxu0 %v344
    %681 = vmatprep.subr.bf16.mxu0 0
    %682 = vmatpush1.bf16.msra.mxu0 0
    %683 = vmatprep.subr.bf16.mxu0 0
    %684 = vmatpush1.bf16.msra.mxu0 0
    %685 = vmatprep.subr.bf16.mxu0 0
    %686 = vmatpush1.bf16.msra.mxu0 0
    %687 = vmatprep.subr.bf16.mxu0 0
    %688 = vmatpush1.bf16.msra.mxu0 0
    %689 = vmatprep.subr.bf16.mxu0 0
    %690 = vmatpush1.bf16.msra.mxu0 0
    %691 = vmatprep.subr.bf16.mxu0 0
    %692 = vmatpush1.bf16.msra.mxu0 0
    %693 = vmatprep.subr.bf16.mxu0 0
    %694 = vmatpush1.bf16.msra.mxu0 0
    %695 = vmatprep.subr.bf16.mxu0 0
    %696 = vmatpush1.bf16.msra.mxu0 0
    %697 = vmatprep.mubr.bf16.mxu0 0
    %698 = vmatmul.mubr.bf16.gmra.mrb[0].mxu0 %v633
    %v699 = vpop.f32.mrb[0].mxu0
    %v700 = vadd.f32 %v412, %v699
    %v701 = vpop.f32.mrb[0].mxu0
    %v702 = vpop.f32.mrb[0].mxu0
    %v703 = vadd.f32 %v417, %v702
    %v704 = vpop.f32.mrb[0].mxu0
    %705 = vmatprep.mubr.bf16.mxu0 0
    %706 = vmatmul.mubr.bf16.gmra.mrb[0].mxu0 %v634
    %v707 = vpop.f32.mrb[0].mxu0
    %v708 = vadd.f32 %v422, %v707
    %v709 = vpop.f32.mrb[0].mxu0
    %v710 = vpop.f32.mrb[0].mxu0
    %v711 = vadd.f32 %v427, %v710
    %v712 = vpop.f32.mrb[0].mxu0
    %713 = vmatprep.mubr.bf16.mxu0 0
    %714 = vmatmul.mubr.bf16.gmra.mrb[0].mxu0 %v635
    %v715 = vpop.f32.mrb[0].mxu0
    %v716 = vadd.f32 %v432, %v715
    %v717 = vpop.f32.mrb[0].mxu0
    %v718 = vpop.f32.mrb[0].mxu0
    %v719 = vadd.f32 %v437, %v718
    %v720 = vpop.f32.mrb[0].mxu0
    %721 = vmatprep.mubr.bf16.mxu0 0
    %722 = vmatmul.mubr.bf16.gmra.mrb[0].mxu0 %v636
    %v723 = vpop.f32.mrb[0].mxu0
    %v724 = vadd.f32 %v442, %v723
    %v725 = vpop.f32.mrb[0].mxu0
    %v726 = vpop.f32.mrb[0].mxu0
    %v727 = vadd.f32 %v447, %v726
    %v728 = vpop.f32.mrb[0].mxu0
    %729 = vmatprep.mubr.bf16.mxu0 0
    %730 = vmatmul.mubr.bf16.gmra.mrb[0].mxu0 %v637
    %v731 = vpop.f32.mrb[0].mxu0
    %v732 = vadd.f32 %v452, %v731
    %v733 = vpop.f32.mrb[0].mxu0
    %v734 = vpop.f32.mrb[0].mxu0
    %v735 = vadd.f32 %v457, %v734
    %v736 = vpop.f32.mrb[0].mxu0
    %737 = vmatprep.mubr.bf16.mxu0 0
    %738 = vmatmul.mubr.bf16.gmra.mrb[0].mxu0 %v638
    %v739 = vpop.f32.mrb[0].mxu0
    %v740 = vadd.f32 %v462, %v739
    %v741 = vpop.f32.mrb[0].mxu0
    %v742 = vpop.f32.mrb[0].mxu0
    %v743 = vadd.f32 %v467, %v742
    %v744 = vpop.f32.mrb[0].mxu0
    %745 = vmatprep.mubr.bf16.mxu0 0
    %746 = vmatmul.mubr.bf16.gmra.mrb[0].mxu0 %v639
    %v747 = vpop.f32.mrb[0].mxu0
    %v748 = vadd.f32 %v472, %v747
    %v749 = vpop.f32.mrb[0].mxu0
    %v750 = vpop.f32.mrb[0].mxu0
    %v751 = vadd.f32 %v477, %v750
    %v752 = vpop.f32.mrb[0].mxu0
    %753 = vmatprep.mubr.bf16.mxu0 0
    %754 = vmatmul.mubr.bf16.gmra.mrb[0].mxu0 %v640
    %v755 = vpop.f32.mrb[0].mxu0
    %v756 = vadd.f32 %v482, %v755
    %v757 = vpop.f32.mrb[0].mxu0
    %v758 = vpop.f32.mrb[0].mxu0
    %v759 = vadd.f32 %v487, %v758
    %v760 = vpop.f32.mrb[0].mxu0
    %761 = vmatprep.mubr.bf16.mxu0 0
    %762 = vmatmul.mubr.bf16.gmra.mrb[0].mxu0 %v641
    %v763 = vpop.f32.mrb[0].mxu0
    %v764 = vadd.f32 %v492, %v763
    %v765 = vpop.f32.mrb[0].mxu0
    %v766 = vpop.f32.mrb[0].mxu0
    %v767 = vadd.f32 %v497, %v766
    %v768 = vpop.f32.mrb[0].mxu0
    %769 = vmatprep.mubr.bf16.mxu0 0
    %770 = vmatmul.mubr.bf16.gmra.mrb[0].mxu0 %v642
    %v771 = vpop.f32.mrb[0].mxu0
    %v772 = vadd.f32 %v502, %v771
    %v773 = vpop.f32.mrb[0].mxu0
    %v774 = vpop.f32.mrb[0].mxu0
    %v775 = vadd.f32 %v507, %v774
    %v776 = vpop.f32.mrb[0].mxu0
    %777 = vmatprep.mubr.bf16.mxu0 0
    %778 = vmatmul.mubr.bf16.gmra.mrb[0].mxu0 %v643
    %v779 = vpop.f32.mrb[0].mxu0
    %v780 = vadd.f32 %v512, %v779
    %v781 = vpop.f32.mrb[0].mxu0
    %v782 = vpop.f32.mrb[0].mxu0
    %v783 = vadd.f32 %v517, %v782
    %v784 = vpop.f32.mrb[0].mxu0
    %785 = vmatprep.mubr.bf16.mxu0 0
    %786 = vmatmul.mubr.bf16.gmra.mrb[0].mxu0 %v644
    %v787 = vpop.f32.mrb[0].mxu0
    %v788 = vadd.f32 %v522, %v787
    %v789 = vpop.f32.mrb[0].mxu0
    %v790 = vpop.f32.mrb[0].mxu0
    %v791 = vadd.f32 %v527, %v790
    %v792 = vpop.f32.mrb[0].mxu0
    %793 = vmatprep.mubr.bf16.mxu0 0
    %794 = vmatmul.mubr.bf16.gmra.mrb[0].mxu0 %v645
    %v795 = vpop.f32.mrb[0].mxu0
    %v796 = vadd.f32 %v532, %v795
    %v797 = vpop.f32.mrb[0].mxu0
    %v798 = vpop.f32.mrb[0].mxu0
    %v799 = vadd.f32 %v537, %v798
    %v800 = vpop.f32.mrb[0].mxu0
    %801 = vmatprep.mubr.bf16.mxu0 0
    %802 = vmatmul.mubr.bf16.gmra.mrb[0].mxu0 %v646
    %v803 = vpop.f32.mrb[0].mxu0
    %v804 = vadd.f32 %v542, %v803
    %v805 = vpop.f32.mrb[0].mxu0
    %v806 = vpop.f32.mrb[0].mxu0
    %v807 = vadd.f32 %v547, %v806
    %v808 = vpop.f32.mrb[0].mxu0
    %809 = vmatprep.mubr.bf16.mxu0 0
    %810 = vmatmul.mubr.bf16.gmra.mrb[0].mxu0 %v647
    %v811 = vpop.f32.mrb[0].mxu0
    %v812 = vadd.f32 %v552, %v811
    %v813 = vpop.f32.mrb[0].mxu0
    %v814 = vpop.f32.mrb[0].mxu0
    %v815 = vadd.f32 %v557, %v814
    %v816 = vpop.f32.mrb[0].mxu0
    %817 = vmatprep.mubr.bf16.mxu0 0
    %818 = vmatmul.mubr.bf16.gmra.mrb[0].mxu0 %v648
    %v819 = vpop.f32.mrb[0].mxu0
    %v820 = vadd.f32 %v562, %v819
    %v821 = vpop.f32.mrb[0].mxu0
    %v822 = vpop.f32.mrb[0].mxu0
    %v823 = vadd.f32 %v567, %v822
    %v824 = vpop.f32.mrb[0].mxu0
    %825 = vdwg.mxu0
    %v826 = vmax.f32 %v700, 0.0
    %v827 = vmax.f32 %v703, 0.0
    %v828 = vmax.f32 %v708, 0.0
    %v829 = vmax.f32 %v711, 0.0
    %v830 = vmax.f32 %v716, 0.0
    %v831 = vmax.f32 %v719, 0.0
    %v832 = vmax.f32 %v724, 0.0
    %v833 = vmax.f32 %v727, 0.0
    %v834 = vmax.f32 %v732, 0.0
    %v835 = vmax.f32 %v735, 0.0
    %v836 = vmax.f32 %v740, 0.0
    %v837 = vmax.f32 %v743, 0.0
    %v838 = vmax.f32 %v748, 0.0
    %v839 = vmax.f32 %v751, 0.0
    %v840 = vmax.f32 %v756, 0.0
    %v841 = vmax.f32 %v759, 0.0
    %v842 = vmax.f32 %v764, 0.0
    %v843 = vmax.f32 %v767, 0.0
    %v844 = vmax.f32 %v772, 0.0
    %v845 = vmax.f32 %v775, 0.0
    %v846 = vmax.f32 %v780, 0.0
    %v847 = vmax.f32 %v783, 0.0
    %v848 = vmax.f32 %v788, 0.0
    %v849 = vmax.f32 %v791, 0.0
    %v850 = vmax.f32 %v796, 0.0
    %v851 = vmax.f32 %v799, 0.0
    %v852 = vmax.f32 %v804, 0.0
    %v853 = vmax.f32 %v807, 0.0
    %v854 = vmax.f32 %v812, 0.0
    %v855 = vmax.f32 %v815, 0.0
    %v856 = vmax.f32 %v820, 0.0
    %v857 = vmax.f32 %v823, 0.0
    %v858 = vpack.c.bf16 %v827, %v826
    %v859 = vpack.c.bf16 %v829, %v828
    %v860 = vpack.c.bf16 %v831, %v830
    %v861 = vpack.c.bf16 %v833, %v832
    %v862 = vpack.c.bf16 %v835, %v834
    %v863 = vpack.c.bf16 %v837, %v836
    %v864 = vpack.c.bf16 %v839, %v838
    %v865 = vpack.c.bf16 %v841, %v840
    %v866 = vpack.c.bf16 %v843, %v842
    %v867 = vpack.c.bf16 %v845, %v844
    %v868 = vpack.c.bf16 %v847, %v846
    %v869 = vpack.c.bf16 %v849, %v848
    %v870 = vpack.c.bf16 %v851, %v850
    %v871 = vpack.c.bf16 %v853, %v852
    %v872 = vpack.c.bf16 %v855, %v854
    %v873 = vpack.c.bf16 %v857, %v856
    %v874 = vld [vmem:[%s5] sm:$0xff]
    %v875 = vld [vmem:[%s6] sm:$0xff]
    %877 = vset.pattern.permute.xlu0 0
    %878 = vperm.xlu0 %877, %v875
    %v879 = vpop.permute.xlu0 %878
    %v882 = vunpack.c.l.b16 %v874
    %v883 = vunpack.c.h.b16 %v874
    %v884 = vpack.c.b16 %v882, %v882
    %v885 = vpack.c.b16 %v883, %v883
    %888 = vmatprep.subr.bf16.mxu0 0
    %889 = vmatpush1.bf16.msra.mxu0 %v858
    %890 = vmatprep.subr.bf16.mxu0 0
    %891 = vmatpush1.bf16.msra.mxu0 %v859
    %892 = vmatprep.subr.bf16.mxu0 0
    %893 = vmatpush1.bf16.msra.mxu0 %v860
    %894 = vmatprep.subr.bf16.mxu0 0
    %895 = vmatpush1.bf16.msra.mxu0 %v861
    %896 = vmatprep.subr.bf16.mxu0 0
    %897 = vmatpush1.bf16.msra.mxu0 %v862
    %898 = vmatprep.subr.bf16.mxu0 0
    %899 = vmatpush1.bf16.msra.mxu0 %v863
    %900 = vmatprep.subr.bf16.mxu0 0
    %901 = vmatpush1.bf16.msra.mxu0 %v864
    %902 = vmatprep.subr.bf16.mxu0 0
    %903 = vmatpush1.bf16.msra.mxu0 %v865
    %904 = vmatprep.subr.bf16.mxu0 0
    %905 = vmatpush1.bf16.msra.mxu0 %v866
    %906 = vmatprep.subr.bf16.mxu0 0
    %907 = vmatpush1.bf16.msra.mxu0 %v867
    %908 = vmatprep.subr.bf16.mxu0 0
    %909 = vmatpush1.bf16.msra.mxu0 %v868
    %910 = vmatprep.subr.bf16.mxu0 0
    %911 = vmatpush1.bf16.msra.mxu0 %v869
    %912 = vmatprep.subr.bf16.mxu0 0
    %913 = vmatpush1.bf16.msra.mxu0 %v870
    %914 = vmatprep.subr.bf16.mxu0 0
    %915 = vmatpush1.bf16.msra.mxu0 %v871
    %916 = vmatprep.subr.bf16.mxu0 0
    %917 = vmatpush1.bf16.msra.mxu0 %v872
    %918 = vmatprep.subr.bf16.mxu0 0
    %919 = vmatpush1.bf16.msra.mxu0 %v873
    %920 = vmatprep.mubr.bf16.mxu0 %v885
    %921 = vmatmul.mubr.bf16.gmra.mrb[0].mxu0 %v884
    %v922 = vpop.f32.mrb[0].mxu0
    %v923 = vadd.f32 %v879, %v922
    %v924 = vpop.f32.mrb[0].mxu0
    %v925 = vpop.f32.mrb[0].mxu0
    %v926 = vpop.f32.mrb[0].mxu0
    %927 = vdwg.mxu0
    %928 = vst [vmem:[#allocation2] sm:$0xff] %v923
    // Predicated region
    $region30: #{tpu_custom_call.1} parent=1 // pred_check
      _
    $region31: #{tpu_custom_call.1} parent=1 // pred_check_branch
      %930 = sbr.rel (0) target = $region33
    $region32: #{tpu_custom_call.1} parent=1 // pred_region
      %s932 = ssub.s32 128, 128
      %933 = vsyncadd [#allocation3], %s932
      %s935 = sshll.u32 [#allocation2], 4
      %s936 = int_to_ptr.vmem [resolvable:$true] %s935
      %938 = dma.vmem_to_hbm [thread:$0]  %s936, 128, %s7, [#allocation3]
    $region33: #{tpu_custom_call.1} parent=1 // pred_fallthru
      _
    // Predicated region
    $region34: #{tpu_custom_call.1} parent=1 // pred_check
      _
    $region35: #{tpu_custom_call.1} parent=1 // pred_check_branch
      %940 = sbr.rel (0) target = $region37
    $region36: #{tpu_custom_call.1} parent=1 // pred_region
      %941 = dma.done [#allocation3], 128
    $region37: #{tpu_custom_call.1} parent=1 // pred_fallthru
      _
    %942 = vsyncpa [#allocation3], 1

</llo_original>
